<compile_context>
chip_gen: v6e
topology: v6e:2x2x1
jax: 0.10.0
libtpu: 0.0.40
codegen_flags: <defaults>
</compile_context>

<pallas_src>
import math

import jax
import jax.numpy as jnp
from jax.experimental import pallas as pl
from jax.experimental.pallas import tpu as pltpu


def _round_up(x, m):
    return ((x + m - 1) // m) * m


# ----------------------------------------------------------------------------------
# Kernel A: single K tile (no accumulator, 2-D grid).  One MXU matmul + fused FMA.
# ----------------------------------------------------------------------------------
def _wnl_kernel_fused(x_ref, wt_ref, scale_ref, bias_ref, o_ref):
    # x_ref:     (tb, K)    native dtype
    # wt_ref:    (K, tn)    pre-transposed weight tile
    # scale_ref: (1, tn)    f32, already folded with 1/(||W_row|| + 1e-8)
    # bias_ref:  (1, tn)    f32
    # o_ref:     (tb, tn)
    acc = jnp.dot(x_ref[...], wt_ref[...], preferred_element_type=jnp.float32)
    o_ref[...] = (acc * scale_ref[...] + bias_ref[...]).astype(o_ref.dtype)


# ----------------------------------------------------------------------------------
# Kernel B: tiled K (3-D grid) with a resident f32 accumulator across the K axis.
# ----------------------------------------------------------------------------------
def _wnl_kernel_acc(x_ref, wt_ref, scale_ref, bias_ref, o_ref, acc_ref):
    k = pl.program_id(2)

    @pl.when(k == 0)
    def _():
        acc_ref[...] = jnp.zeros_like(acc_ref)

    acc_ref[...] += jnp.dot(
        x_ref[...], wt_ref[...], preferred_element_type=jnp.float32
    )

    @pl.when(k == pl.num_programs(2) - 1)
    def _():
        # Single fused multiply-add epilogue: scale already contains 1/weight_norm.
        o_ref[...] = (acc_ref[...] * scale_ref[...] + bias_ref[...]).astype(o_ref.dtype)


def weight_normalized_linear(x, weight, scale=None, bias=None, *, tb=None, tn=None, tk=None):
    """Pallas forward of WeightNormalizedLinear.

    x:      (B, in_features)
    weight: (out_features, in_features)   (PyTorch convention)
    scale:  optional (out_features,)      (module's scale=True branch)
    bias:   optional (out_features,)      (module's bias=True branch)
    """
    B, K = x.shape
    N, K_w = weight.shape
    assert K_w == K

    # ---- grid-invariant epilogue constants, hoisted out of the kernel --------------
    w32 = weight.astype(jnp.float32)
    inv_norm = 1.0 / (jnp.sqrt(jnp.sum(w32 * w32, axis=1)) + 1e-8)          # (N,)
    scale_eff = inv_norm if scale is None else scale.astype(jnp.float32) * inv_norm
    bias_eff = (jnp.zeros((N,), jnp.float32) if bias is None
                else bias.astype(jnp.float32))

    # ---- tile selection: lane-dense N, sublane-aligned M, MXU-sized K chunks -------
    if tb is None:
        tb = min(512, _round_up(B, 8))
    else:
        tb = min(_round_up(tb, 8), _round_up(B, 8))
    B_pad = _round_up(B, tb)

    if tn is None:
        tn = min(512, _round_up(N, 128))
    else:
        tn = min(_round_up(tn, 128), _round_up(N, 128))
    N_pad = _round_up(N, tn)

    if tk is None:
        tk = K if K <= 1024 else 512
    if tk >= K:
        tk = K                      # single K tile, full-extent block (no 128 constraint)
        K_pad = K
    else:
        tk = _round_up(tk, 128)     # partial K tile must be lane-aligned for the x block
        K_pad = _round_up(K, tk)

    single_k = (K_pad == tk)

    # ---- zero-pad operands (zeros are neutral for the matmul; padding sliced off) --
    x_p = jnp.pad(x, ((0, B_pad - B), (0, K_pad - K)))
    wt_p = jnp.pad(weight.T, ((0, K_pad - K), (0, N_pad - N)))            # (K_pad, N_pad)
    scale2d = jnp.pad(scale_eff, (0, N_pad - N)).reshape(1, N_pad)
    bias2d = jnp.pad(bias_eff, (0, N_pad - N)).reshape(1, N_pad)

    # ---- VMEM budget + cost estimate ------------------------------------------------
    x_it = jnp.dtype(x.dtype).itemsize
    w_it = jnp.dtype(weight.dtype).itemsize
    o_it = x_it
    vmem_bytes = (
        2 * (tb * tk * x_it + tk * tn * w_it + tb * tn * o_it + 2 * tn * 4)  # dbl-buffered
        + (0 if single_k else tb * tn * 4)                                   # accumulator
    )
    vmem_limit = int(min(64 * 2**20, max(16 * 2**20, 2 * vmem_bytes)))

    cost = pl.CostEstimate(
        flops=2 * B_pad * K_pad * N_pad,
        transcendentals=0,
        bytes_accessed=(B_pad * K_pad * x_it + K_pad * N_pad * w_it
                        + B_pad * N_pad * o_it + 2 * N_pad * 4),
    )

    if single_k:
        grid = (B_pad // tb, N_pad // tn)
        grid_spec = pltpu.PrefetchScalarGridSpec(
            num_scalar_prefetch=0,
            grid=grid,
            in_specs=[
                pl.BlockSpec((tb, tk), lambda i, j: (i, 0)),      # x tile (full K)
                pl.BlockSpec((tk, tn), lambda i, j: (0, j)),      # Wt tile (full K)
                pl.BlockSpec((1, tn), lambda i, j: (0, j)),       # folded scale
                pl.BlockSpec((1, tn), lambda i, j: (0, j)),       # bias
            ],
            out_specs=pl.BlockSpec((tb, tn), lambda i, j: (i, j)),
        )
        kernel = _wnl_kernel_fused
        dim_sem = ("parallel", "parallel")
    else:
        grid = (B_pad // tb, N_pad // tn, K_pad // tk)
        grid_spec = pltpu.PrefetchScalarGridSpec(
            num_scalar_prefetch=0,
            grid=grid,
            in_specs=[
                pl.BlockSpec((tb, tk), lambda i, j, k: (i, k)),   # x tile
                pl.BlockSpec((tk, tn), lambda i, j, k: (k, j)),   # Wt tile
                pl.BlockSpec((1, tn), lambda i, j, k: (0, j)),    # folded scale
                pl.BlockSpec((1, tn), lambda i, j, k: (0, j)),    # bias
            ],
            out_specs=pl.BlockSpec((tb, tn), lambda i, j, k: (i, j)),
            scratch_shapes=[pltpu.VMEM((tb, tn), jnp.float32)],
        )
        kernel = _wnl_kernel_acc
        dim_sem = ("parallel", "parallel", "arbitrary")

    out_p = pl.pallas_call(
        kernel,
        out_shape=jax.ShapeDtypeStruct((B_pad, N_pad), x.dtype),
        grid_spec=grid_spec,
        compiler_params=pltpu.CompilerParams(
            dimension_semantics=dim_sem,
            vmem_limit_bytes=vmem_limit,
        ),
        cost_estimate=cost,
    )(x_p, wt_p, scale2d, bias2d)

    return out_p[:B, :N]


def _reference(x, weight, scale=None, bias=None):
    y = x.astype(jnp.float32) @ weight.astype(jnp.float32).T
    wnorm = jnp.sqrt(jnp.sum(weight.astype(jnp.float32) ** 2, axis=1)) + 1e-8
    y = y / wnorm[None, :]
    if scale is not None:
        y = y * scale.astype(jnp.float32)[None, :]
    if bias is not None:
        y = y + bias.astype(jnp.float32)[None, :]
    return y.astype(x.dtype)


if __name__ == "__main__":
    key = jax.random.PRNGKey(0)
    k_x, k_w, k_b, k_x2, k_w2, k_b2 = jax.random.split(key, 6)

    # ---- Test 1: small shapes matching the module's typical use (single-K kernel) ---
    batch, in_features, out_features = 8, 32, 64
    init_factor, init_scale = 1.0, 1.0
    stdv = 1.0 * init_factor / math.sqrt(in_features)
    weight = jax.random.uniform(
        k_w, (out_features, in_features), jnp.float32, minval=-stdv, maxval=stdv
    )
    scale = jnp.full((out_features,), init_scale, jnp.float32)
    bias = jax.random.uniform(
        k_b, (out_features,), jnp.float32, minval=-stdv, maxval=stdv
    )
    x = jax.random.normal(k_x, (batch, in_features), jnp.float32)

    # Default module config (scale=False, bias=False):
    out_default = jax.block_until_ready(weight_normalized_linear(x, weight))
    ref_default = _reference(x, weight)
    assert out_default.shape == (batch, out_features)
    assert jnp.allclose(out_default, ref_default, atol=1e-4, rtol=1e-4)

    # With scale + bias:
    out_sb = jax.block_until_ready(weight_normalized_linear(x, weight, scale, bias))
    ref_sb = _reference(x, weight, scale, bias)
    assert jnp.allclose(out_sb, ref_sb, atol=1e-4, rtol=1e-4)

    # ---- Test 2: ragged shapes exercising padding + multi-step M/N/K grid -----------
    b2, k2, n2 = 48, 256, 200
    stdv2 = 1.0 / math.sqrt(k2)
    weight2 = jax.random.uniform(
        k_w2, (n2, k2), jnp.float32, minval=-stdv2, maxval=stdv2
    )
    bias2 = jax.random.uniform(k_b2, (n2,), jnp.float32, minval=-stdv2, maxval=stdv2)
    x2 = jax.random.normal(k_x2, (b2, k2), jnp.float32)

    out2 = jax.block_until_ready(
        weight_normalized_linear(x2, weight2, None, bias2, tb=16, tn=128, tk=128)
    )
    ref2 = _reference(x2, weight2, None, bias2)
    assert out2.shape == (b2, n2)
    assert jnp.allclose(out2, ref2, atol=1e-4, rtol=1e-4)

    # ---- Test 3: bf16 operands (MXU native dtype path) -------------------------------
    xb = x.astype(jnp.bfloat16)
    wb = weight.astype(jnp.bfloat16)
    out_bf16 = jax.block_until_ready(weight_normalized_linear(xb, wb, scale, bias))
    ref_bf16 = _reference(xb, wb, scale, bias)
    assert out_bf16.dtype == jnp.bfloat16
    assert jnp.allclose(out_bf16.astype(jnp.float32), ref_bf16.astype(jnp.float32),
                        atol=2e-2, rtol=2e-2)

    print("KERNEL_OK")
</pallas_src>

<mosaic_0001>
module attributes {stable_mosaic.version = 11 : i64} {
  func.func @_wnl_kernel_fused(%arg0: i32, %arg1: i32, %arg2: memref<8x32xf32, #tpu.memory_space<vmem>>, %arg3: memref<32x128xf32, #tpu.memory_space<vmem>>, %arg4: memref<1x128xf32, #tpu.memory_space<vmem>>, %arg5: memref<1x128xf32, #tpu.memory_space<vmem>>, %arg6: memref<8x128xf32, #tpu.memory_space<vmem>>) attributes {dimension_semantics = [#tpu.dimension_semantics<parallel>, #tpu.dimension_semantics<parallel>], iteration_bounds = array<i64: 1, 1>, scalar_prefetch = 0 : i64, scratch_operands = 0 : i64, tpu.core_type = #tpu.core_type<tc>, window_params = [{transform_indices = @transform_0, window_bounds = array<i64: 8, 32>}, {transform_indices = @transform_1, window_bounds = array<i64: 32, 128>}, {transform_indices = @transform_2, window_bounds = array<i64: 1, 128>}, {transform_indices = @transform_3, window_bounds = array<i64: 1, 128>}, {transform_indices = @transform_4, window_bounds = array<i64: 8, 128>}]} {
    %c0 = arith.constant 0 : index
    %c0_0 = arith.constant 0 : index
    %0 = vector.load %arg2[%c0, %c0_0] : memref<8x32xf32, #tpu.memory_space<vmem>>, vector<8x32xf32>
    %c0_1 = arith.constant 0 : index
    %c0_2 = arith.constant 0 : index
    %1 = vector.load %arg3[%c0_1, %c0_2] : memref<32x128xf32, #tpu.memory_space<vmem>>, vector<32x128xf32>
    %cst = arith.constant dense<0.000000e+00> : vector<8x128xf32>
    %2 = tpu.matmul %0, %1, %cst {dimension_numbers = #tpu.dot_dimension_numbers<[1], [0], [0], [1], [0, 0, 1, 1], [], []>} : vector<8x32xf32>, vector<32x128xf32>, vector<8x128xf32> -> vector<8x128xf32>
    %c0_3 = arith.constant 0 : index
    %c0_4 = arith.constant 0 : index
    %3 = vector.load %arg4[%c0_3, %c0_4] : memref<1x128xf32, #tpu.memory_space<vmem>>, vector<1x128xf32>
    %4 = vector.broadcast %3 : vector<1x128xf32> to vector<8x128xf32>
    %5 = arith.mulf %2, %4 : vector<8x128xf32>
    %c0_5 = arith.constant 0 : index
    %c0_6 = arith.constant 0 : index
    %6 = vector.load %arg5[%c0_5, %c0_6] : memref<1x128xf32, #tpu.memory_space<vmem>>, vector<1x128xf32>
    %7 = vector.broadcast %6 : vector<1x128xf32> to vector<8x128xf32>
    %8 = arith.addf %5, %7 : vector<8x128xf32>
    %c0_7 = arith.constant 0 : index
    %c0_8 = arith.constant 0 : index
    %9 = vector.load %arg6[%c0_7, %c0_8] : memref<8x128xf32, #tpu.memory_space<vmem>>, vector<8x128xf32>
    tpu.vector_store %arg6[%c0_7, %c0_8], %8 {strides = array<i32>} : memref<8x128xf32, #tpu.memory_space<vmem>>, vector<8x128xf32>,
    return
  }
  func.func @transform_0(%arg0: i32, %arg1: i32) -> (i32, i32) {
    %c0_i32 = arith.constant 0 : i32
    %c0_i32_0 = arith.constant 0 : i32
    return %arg0, %c0_i32 : i32, i32
  }
  func.func @transform_1(%arg0: i32, %arg1: i32) -> (i32, i32) {
    %c0_i32 = arith.constant 0 : i32
    %c0_i32_0 = arith.constant 0 : i32
    return %c0_i32, %arg1 : i32, i32
  }
  func.func @transform_2(%arg0: i32, %arg1: i32) -> (i32, i32) {
    %c0_i32 = arith.constant 0 : i32
    %c0_i32_0 = arith.constant 0 : i32
    return %c0_i32, %arg1 : i32, i32
  }
  func.func @transform_3(%arg0: i32, %arg1: i32) -> (i32, i32) {
    %c0_i32 = arith.constant 0 : i32
    %c0_i32_0 = arith.constant 0 : i32
    return %c0_i32, %arg1 : i32, i32
  }
  func.func @transform_4(%arg0: i32, %arg1: i32) -> (i32, i32) {
    %c0_i32 = arith.constant 0 : i32
    return %arg0, %arg1 : i32, i32
  }
}

</mosaic_0001>

<llo_original>
// kernel: tpu_custom_call.1
$region0: #{tpu_custom_call.1}
  #allocation0 [shape = 'u32[]', space=smem, size = 0x4, offset = 0x4, fixed_abs, tag = 'smem constant byte address 0x4 - core index']
  #allocation1 [shape = 'u32[144,128]{1,0:T(1,128)}', space=vmem, size = 0x12000, scoped, tag = 'internal scratch']
  %s0 = inlined_call_operand.hbm [shape: f32[8,32], index: 0, kind: input, shape index: {}]
  %s1 = inlined_call_operand.hbm [shape: f32[32,128], index: 1, kind: input, shape index: {}]
  %s2 = inlined_call_operand.vmem [shape: f32[1,128], index: 2, kind: input, shape index: {}]
  %s3 = inlined_call_operand.vmem [shape: f32[1,128], index: 3, kind: input, shape index: {}]
  %s4 = inlined_call_operand.hbm [shape: f32[8,128], index: 4, kind: output, shape index: {}]
  %s5 = sld [smem:[#allocation0]]
  $region34: #{tpu_custom_call.1} parent=0
    _
  %s7 = ssub.s32 1, %s5
  %s8 = scalar_select 0, %s7, %s5
  $region1: #{tpu_custom_call.1} parent=0
    #allocation2 [shape = 'u8[4096]{0}', space=vmem, size = 0x1000, scoped, tag = 'input window, operand 0, single buffered']
    #allocation3 [shape = 's32[1]{0}', space=sflag, size = 0x4, scoped, tag = 'scoped memory for tpu_custom_call.1']
    #allocation4 [shape = 's32[1]{0}', space=sflag, size = 0x4, scoped, tag = 'scoped memory for tpu_custom_call.1']
    #allocation5 [shape = 'u8[16384]{0}', space=vmem, size = 0x4000, scoped, tag = 'input window, operand 1, single buffered']
    #allocation6 [shape = 's32[1]{0}', space=sflag, size = 0x4, scoped, tag = 'scoped memory for tpu_custom_call.1']
    #allocation7 [shape = 'u8[4096]{0}', space=vmem, size = 0x1000, scoped, tag = 'output window, operand 0, single buffered']
    %9 = vsyncpa [#allocation3], 0
    %10 = vsyncpa [#allocation6], 0
    %11 = vsyncpa [#allocation4], 0
    // Predicated region
    $region2: #{tpu_custom_call.1} parent=1 // pred_check
      _
    $region3: #{tpu_custom_call.1} parent=1 // pred_check_branch
      %13 = sbr.rel (0) target = $region5
    $region4: #{tpu_custom_call.1} parent=1 // pred_region
      %s15 = ssub.s32 128, 128
      %16 = vsyncadd [#allocation3], %s15
      %s18 = sshll.u32 [#allocation2], 4
      %s19 = int_to_ptr.vmem [resolvable:$true] %s18
      %21 = dma.hbm_to_vmem [thread:$0]  %s0, 128, %s19, [#allocation3]
    $region5: #{tpu_custom_call.1} parent=1 // pred_fallthru
      _
    // Predicated region
    $region6: #{tpu_custom_call.1} parent=1 // pred_check
      _
    $region7: #{tpu_custom_call.1} parent=1 // pred_check_branch
      %23 = sbr.rel (0) target = $region9
    $region8: #{tpu_custom_call.1} parent=1 // pred_region
      %s25 = ssub.s32 512, 512
      %26 = vsyncadd [#allocation6], %s25
      %s27 = sshll.u32 [#allocation5], 4
      %s28 = int_to_ptr.vmem [resolvable:$true] %s27
      %33 = dma.hbm_to_vmem [thread:$0]  %s1, 512, %s28, [#allocation6], 128, 128, 8
    $region9: #{tpu_custom_call.1} parent=1 // pred_fallthru
      _
    // Predicated region
    $region10: #{tpu_custom_call.1} parent=1 // pred_check
      _
    $region11: #{tpu_custom_call.1} parent=1 // pred_check_branch
      %35 = sbr.rel (0) target = $region13
    $region12: #{tpu_custom_call.1} parent=1 // pred_region
      _
    $region13: #{tpu_custom_call.1} parent=1 // pred_fallthru
      _
    // Predicated region
    $region14: #{tpu_custom_call.1} parent=1 // pred_check
      _
    $region15: #{tpu_custom_call.1} parent=1 // pred_check_branch
      %37 = sbr.rel (0) target = $region17
    $region16: #{tpu_custom_call.1} parent=1 // pred_region
      _
    $region17: #{tpu_custom_call.1} parent=1 // pred_fallthru
      _
    // Predicated region
    $region18: #{tpu_custom_call.1} parent=1 // pred_check
      _
    $region19: #{tpu_custom_call.1} parent=1 // pred_check_branch
      %39 = sbr.rel (0) target = $region21
    $region20: #{tpu_custom_call.1} parent=1 // pred_region
      %40 = dma.done [#allocation3], 128
    $region21: #{tpu_custom_call.1} parent=1 // pred_fallthru
      _
    // Predicated region
    $region22: #{tpu_custom_call.1} parent=1 // pred_check
      _
    $region23: #{tpu_custom_call.1} parent=1 // pred_check_branch
      %42 = sbr.rel (0) target = $region25
    $region24: #{tpu_custom_call.1} parent=1 // pred_region
      %43 = dma.done [#allocation6], 512
    $region25: #{tpu_custom_call.1} parent=1 // pred_fallthru
      _
    %v44 = vld [vmem:[#allocation2] sm:$0xff]
    %v45 = vld [vmem:[#allocation5] sm:$0xff]
    %v46 = vld [vmem:[#allocation5 + $0x8] sm:$0xff]
    %v47 = vld [vmem:[#allocation5 + $0x10] sm:$0xff]
    %v48 = vld [vmem:[#allocation5 + $0x18] sm:$0xff]
    %vm49 = vcmask 261120
    %v51 = vsel %vm49, %v44, 0
    %53 = vmatprep.subr.mxu0 0.0
    %54 = vmatpush1.msra.mxu0 0.0
    %55 = vmatprep.subr.mxu0 0.0
    %56 = vmatpush1.msra.mxu0 0.0
    %57 = vmatprep.subr.mxu0 0.0
    %58 = vmatpush1.msra.mxu0 0.0
    %59 = vmatprep.subr.mxu0 0.0
    %60 = vmatpush1.msra.mxu0 0.0
    %61 = vmatprep.subr.mxu0 0.0
    %62 = vmatpush1.msra.mxu0 0.0
    %63 = vmatprep.subr.mxu0 0.0
    %64 = vmatpush1.msra.mxu0 0.0
    %65 = vmatprep.subr.mxu0 0.0
    %66 = vmatpush1.msra.mxu0 0.0
    %67 = vmatprep.subr.mxu0 0.0
    %68 = vmatpush1.msra.mxu0 0.0
    %69 = vmatprep.subr.mxu0 0.0
    %70 = vmatpush1.msra.mxu0 0.0
    %71 = vmatprep.subr.mxu0 0.0
    %72 = vmatpush1.msra.mxu0 0.0
    %73 = vmatprep.subr.mxu0 0.0
    %74 = vmatpush1.msra.mxu0 0.0
    %75 = vmatprep.subr.mxu0 0.0
    %76 = vmatpush1.msra.mxu0 0.0
    %77 = vmatprep.subr.mxu0 0.0
    %78 = vmatpush1.msra.mxu0 %v48
    %79 = vmatprep.subr.mxu0 0.0
    %80 = vmatpush1.msra.mxu0 %v47
    %81 = vmatprep.subr.mxu0 0.0
    %82 = vmatpush1.msra.mxu0 %v46
    %83 = vmatprep.subr.mxu0 0.0
    %84 = vmatpush1.msra.mxu0 %v45
    %85 = vmatprep.subr.mxu0 0.0
    %86 = vmatpush2.msra.mxu0 0.0
    %87 = vmatprep.subr.mxu0 0.0
    %88 = vmatpush2.msra.mxu0 0.0
    %89 = vmatprep.subr.mxu0 0.0
    %90 = vmatpush2.msra.mxu0 0.0
    %91 = vmatprep.subr.mxu0 0.0
    %92 = vmatpush2.msra.mxu0 0.0
    %93 = vmatprep.subr.mxu0 0.0
    %94 = vmatpush2.msra.mxu0 0.0
    %95 = vmatprep.subr.mxu0 0.0
    %96 = vmatpush2.msra.mxu0 0.0
    %97 = vmatprep.subr.mxu0 0.0
    %98 = vmatpush2.msra.mxu0 0.0
    %99 = vmatprep.subr.mxu0 0.0
    %100 = vmatpush2.msra.mxu0 0.0
    %101 = vmatprep.subr.mxu0 0.0
    %102 = vmatpush2.msra.mxu0 0.0
    %103 = vmatprep.subr.mxu0 0.0
    %104 = vmatpush2.msra.mxu0 0.0
    %105 = vmatprep.subr.mxu0 0.0
    %106 = vmatpush2.msra.mxu0 0.0
    %107 = vmatprep.subr.mxu0 0.0
    %108 = vmatpush2.msra.mxu0 0.0
    %109 = vmatprep.subr.mxu0 0.0
    %110 = vmatpush2.msra.mxu0 0.0
    %111 = vmatprep.subr.mxu0 0.0
    %112 = vmatpush2.msra.mxu0 0.0
    %113 = vmatprep.subr.mxu0 0.0
    %114 = vmatpush2.msra.mxu0 0.0
    %115 = vmatprep.subr.mxu0 0.0
    %116 = vmatpush2.msra.mxu0 0.0
    %117 = vmatprep.mubr.f32.mxu0 0.0
    %118 = vmatmul.mubr.f32.gmra.mxu0 %v51
    %v119 = vpop.f32.mrf.mxu0
    %v120 = vadd.f32 0.0, %v119
    %v121 = vpop.f32.mrf.mxu0
    %122 = vdwg.mxu0
    %v123 = vld [vmem:[%s2] sm:$0x1]
    %v125 = vlaneseq
    %v126 = vshrl.u32 %v125, 7
    %v127 = vsub.s32 0, %v126
    %v128 = vrot.slane %v123, %v127
    %v130 = vmul.f32 %v120, %v128
    %v131 = vld [vmem:[%s3] sm:$0x1]
    %v133 = vlaneseq
    %v134 = vshrl.u32 %v133, 7
    %v135 = vsub.s32 0, %v134
    %v136 = vrot.slane %v131, %v135
    %v138 = vadd.f32 %v130, %v136
    %139 = vst [vmem:[#allocation7] sm:$0xff] %v138
    // Predicated region
    $region26: #{tpu_custom_call.1} parent=1 // pred_check
      _
    $region27: #{tpu_custom_call.1} parent=1 // pred_check_branch
      %141 = sbr.rel (0) target = $region29
    $region28: #{tpu_custom_call.1} parent=1 // pred_region
      %s143 = ssub.s32 128, 128
      %144 = vsyncadd [#allocation4], %s143
      %s146 = sshll.u32 [#allocation7], 4
      %s147 = int_to_ptr.vmem [resolvable:$true] %s146
      %149 = dma.vmem_to_hbm [thread:$0]  %s147, 128, %s4, [#allocation4]
    $region29: #{tpu_custom_call.1} parent=1 // pred_fallthru
      _
    // Predicated region
    $region30: #{tpu_custom_call.1} parent=1 // pred_check
      _
    $region31: #{tpu_custom_call.1} parent=1 // pred_check_branch
      %151 = sbr.rel (0) target = $region33
    $region32: #{tpu_custom_call.1} parent=1 // pred_region
      %152 = dma.done [#allocation4], 128
    $region33: #{tpu_custom_call.1} parent=1 // pred_fallthru
      _
    %153 = vsyncpa [#allocation3], 1
    %154 = vsyncpa [#allocation6], 1
    %155 = vsyncpa [#allocation4], 1

</llo_original>
